<compile_context>
chip_gen: v7x
topology: tpu7x:2x2x1
jax: 0.10.0
libtpu: 0.0.40
codegen_flags: <defaults>
</compile_context>

<pallas_src>
import functools

import jax
import jax.numpy as jnp
from jax.experimental import pallas as pl
from jax.experimental.pallas import tpu as pltpu


def ppo_fused_kernel(x_ref, w_ref, b_ref, out_ref, *,
                     state_dim, hidden_dim, head_rows):
    """One batch tile (batch on the lane axis) of the full forward pass."""
    H = hidden_dim
    f32 = jnp.float32
    mxu_dtype = w_ref.dtype                         # bf16 (fast path) or f32

    x = x_ref[...].astype(f32)                      # (S, tb)  lane-dense batch

    # ---- layer 1 + ReLU: rank-1 outer products on the VPU (K = S is tiny) -----
    b1 = b_ref[0:H, :].astype(f32)                  # (H, 1) -> lane broadcast
    if state_dim <= 8:
        w1 = w_ref[0:H, 0:state_dim].astype(f32)    # (H, S), f32 even if slab is bf16
        h1 = b1 + w1[:, 0:1] * x[0:1, :]            # (H,1)*(1,tb) -> (H,tb)
        for k in range(1, state_dim):               # unrolled at trace time
            h1 = h1 + w1[:, k:k + 1] * x[k:k + 1, :]
    else:
        h1 = jnp.dot(w_ref[0:H, 0:state_dim], x.astype(mxu_dtype),
                     preferred_element_type=f32) + b1
    h1 = jnp.maximum(h1, 0.0)

    # ---- layer 2 + ReLU: h2^T = W2 @ h1^T (MXU, f32 accumulate) ---------------
    h2 = jnp.dot(w_ref[H:2 * H, :], h1.astype(mxu_dtype),
                 preferred_element_type=f32)
    h2 = jnp.maximum(h2 + b_ref[H:2 * H, :].astype(f32), 0.0)

    # ---- fused policy+value head: out^T = [Wp; Wv; 0pad] @ h2^T ---------------
    out = jnp.dot(w_ref[2 * H:2 * H + head_rows, :], h2.astype(mxu_dtype),
                  preferred_element_type=f32)
    out = out + b_ref[2 * H:2 * H + head_rows, :].astype(f32)
    out_ref[...] = out.astype(out_ref.dtype)        # (head_rows, tb) lane-dense store


def ppo_forward(state, packed_params, *, action_dim,
                block_batch=2048, min_grid_steps=1):
    """state: (B, state_dim) f32. Returns (policy_logits (B, A), value (B, 1)).

    block_batch: batch-tile size in lanes (rounded to a multiple of 128).
    min_grid_steps: set to 2 on v7x so both TensorCores get a grid step.
    """
    w_slab, b_col = packed_params
    B, state_dim = state.shape
    rows, hidden_dim = w_slab.shape
    head_dim = action_dim + 1
    head_rows = rows - 2 * hidden_dim
    assert head_rows >= head_dim and head_rows % 8 == 0
    assert b_col.shape == (rows, 1)
    assert state_dim <= hidden_dim

    # Batch lives on the lane axis: a tile must be a multiple of 128 lanes unless it
    # covers the whole batch in one step.
    block_batch = max(128, (block_batch // 128) * 128)
    if min_grid_steps > 1 and B > 128:
        per_step = -(-B // min_grid_steps)                   # ceil(B / steps)
        per_step = ((per_step + 127) // 128) * 128
        block_batch = min(block_batch, per_step)
    tb = B if B <= block_batch else block_batch
    grid = (pl.cdiv(B, tb),)
    # NOTE: when B % tb != 0 the last tile reads undefined pad lanes; batch columns
    # are fully independent in this layout, so garbage stays in lanes whose output
    # is discarded on writeback. Do not "fix" this with an expensive mask.

    x_t = state.T                                            # (S, B) lane-dense batch

    flops = 2 * B * (state_dim * hidden_dim
                     + hidden_dim * hidden_dim
                     + hidden_dim * head_dim)
    bytes_accessed = (x_t.size * x_t.dtype.itemsize
                      + w_slab.size * w_slab.dtype.itemsize
                      + b_col.size * b_col.dtype.itemsize
                      + B * head_rows * 4)

    kernel = functools.partial(ppo_fused_kernel, state_dim=state_dim,
                               hidden_dim=hidden_dim, head_rows=head_rows)

    out_t = pl.pallas_call(
        kernel,
        out_shape=jax.ShapeDtypeStruct((head_rows, B), jnp.float32),
        grid=grid,
        in_specs=[
            pl.BlockSpec((state_dim, tb), lambda i: (0, i)),     # batch tile (pipelined)
            pl.BlockSpec((rows, hidden_dim), lambda i: (0, 0)),  # weight slab: VMEM-resident
            pl.BlockSpec((rows, 1), lambda i: (0, 0)),           # bias column: VMEM-resident
        ],
        out_specs=pl.BlockSpec((head_rows, tb), lambda i: (0, i)),
        compiler_params=pltpu.CompilerParams(
            dimension_semantics=("parallel",)),
        cost_estimate=pl.CostEstimate(flops=flops, transcendentals=0,
                                      bytes_accessed=bytes_accessed),
    )(x_t, w_slab, b_col)

    out = out_t.T                                            # (B, head_rows)
    return out[:, :action_dim], out[:, action_dim:head_dim]


def orthogonal(key, rows, cols, dtype=jnp.float32):
    """Deterministic orthogonal init (semantics of nn.init.orthogonal_)."""
    n = max(rows, cols)
    a = jax.random.normal(key, (n, n), dtype=jnp.float32)
    q, r = jnp.linalg.qr(a)
    q = q * jnp.sign(jnp.diagonal(r))[None, :]
    return q[:rows, :cols].astype(dtype)


def init_ppo_params(key, state_dim, action_dim, hidden_dim):
    """PyTorch-native (out, in) Linear weights, orthogonal init, zero biases."""
    k1, k2, k3, k4 = jax.random.split(key, 4)
    w1 = orthogonal(k1, hidden_dim, state_dim)     # (H, S)
    w2 = orthogonal(k2, hidden_dim, hidden_dim)    # (H, H)
    wp = orthogonal(k3, action_dim, hidden_dim)    # (A, H)
    wv = orthogonal(k4, 1, hidden_dim)             # (1, H)
    b1 = jnp.zeros((hidden_dim,), jnp.float32)
    b2 = jnp.zeros((hidden_dim,), jnp.float32)
    bp = jnp.zeros((action_dim,), jnp.float32)
    bv = jnp.zeros((1,), jnp.float32)
    return (w1, b1, w2, b2, wp, bp, wv, bv)


def pack_params(params, param_dtype=jnp.bfloat16):
    """Pack all (out,in) weights into one (2H+head_rows, H) slab and all biases
    into one (2H+head_rows, 1) f32 column (biases always f32)."""
    w1, b1, w2, b2, wp, bp, wv, bv = params
    H, S = w1.shape
    A = wp.shape[0]
    head_dim = A + 1
    head_rows = ((head_dim + 7) // 8) * 8
    rows = 2 * H + head_rows

    w_slab = jnp.zeros((rows, H), jnp.float32)
    w_slab = w_slab.at[0:H, 0:S].set(w1)
    w_slab = w_slab.at[H:2 * H, :].set(w2)
    w_slab = w_slab.at[2 * H:2 * H + A, :].set(wp)
    w_slab = w_slab.at[2 * H + A:2 * H + head_dim, :].set(wv)

    b_col = jnp.zeros((rows, 1), jnp.float32)
    b_col = b_col.at[0:H, 0].set(b1)
    b_col = b_col.at[H:2 * H, 0].set(b2)
    b_col = b_col.at[2 * H:2 * H + A, 0].set(bp)
    b_col = b_col.at[2 * H + A:2 * H + head_dim, 0].set(bv)
    return w_slab.astype(param_dtype), b_col


if __name__ == "__main__":
    # MountainCar-like sizes: state_dim=2, action_dim=3; module default hidden=128.
    state_dim, action_dim, hidden_dim, batch = 2, 3, 128, 256

    key = jax.random.PRNGKey(0)
    pkey, xkey = jax.random.split(key)
    params = init_ppo_params(pkey, state_dim, action_dim, hidden_dim)

    # The module inits biases to 0; perturb them here so the bias plumbing is
    # actually exercised by the numerical check (reference uses the same values).
    bkeys = jax.random.split(xkey, 5)
    w1, b1, w2, b2, wp, bp, wv, bv = params
    b1 = 0.1 * jax.random.normal(bkeys[0], b1.shape, jnp.float32)
    b2 = 0.1 * jax.random.normal(bkeys[1], b2.shape, jnp.float32)
    bp = 0.1 * jax.random.normal(bkeys[2], bp.shape, jnp.float32)
    bv = 0.1 * jax.random.normal(bkeys[3], bv.shape, jnp.float32)
    params = (w1, b1, w2, b2, wp, bp, wv, bv)
    state = jax.random.normal(bkeys[4], (batch, state_dim), dtype=jnp.float32)

    # Pure-JAX reference of the same forward pass (f32).
    h = jnp.maximum(state @ w1.T + b1, 0.0)
    h = jnp.maximum(h @ w2.T + b2, 0.0)
    ref_logits = h @ wp.T + bp
    ref_value = h @ wv.T + bv

    # 1) exact-math path: f32 slab, tb=128 -> 2 grid steps (exercises the batch grid).
    packed_f32 = pack_params(params, param_dtype=jnp.float32)
    logits, value = ppo_forward(state, packed_f32, action_dim=action_dim,
                                block_batch=128)
    jax.block_until_ready((logits, value))
    assert logits.shape == (batch, action_dim) and value.shape == (batch, 1)
    assert jnp.allclose(logits, ref_logits, atol=1e-5)
    assert jnp.allclose(value, ref_value, atol=1e-5)

    # 2) fast MXU path: bf16 slab (f32 accumulate), default large tile (single step).
    packed_bf16 = pack_params(params, param_dtype=jnp.bfloat16)
    logits_bf, value_bf = ppo_forward(state, packed_bf16, action_dim=action_dim)
    jax.block_until_ready((logits_bf, value_bf))
    assert jnp.allclose(logits_bf, ref_logits, atol=3e-2)
    assert jnp.allclose(value_bf, ref_value, atol=3e-2)

    # 3) small-batch "env stepping" path (single tile, lane dim == B).
    logits_s, value_s = ppo_forward(state[:8], packed_f32, action_dim=action_dim)
    jax.block_until_ready((logits_s, value_s))
    assert jnp.allclose(logits_s, ref_logits[:8], atol=1e-5)
    assert jnp.allclose(value_s, ref_value[:8], atol=1e-5)

    # TODO(synk): Categorical sampling / log_prob / entropy (get_action_and_value,
    # evaluate_actions) are left to plain JAX outside the kernel.
    print("KERNEL_OK")
</pallas_src>

<mosaic_0001>
module attributes {stable_mosaic.version = 11 : i64} {
  func.func @ppo_fused_kernel(%arg0: i32, %arg1: memref<2x128xf32, #tpu.memory_space<vmem>>, %arg2: memref<264x128xf32, #tpu.memory_space<vmem>>, %arg3: memref<264x1xf32, #tpu.memory_space<vmem>>, %arg4: memref<8x128xf32, #tpu.memory_space<vmem>>) attributes {dimension_semantics = [#tpu.dimension_semantics<parallel>], iteration_bounds = array<i64: 2>, scalar_prefetch = 0 : i64, scratch_operands = 0 : i64, tpu.core_type = #tpu.core_type<tc>, window_params = [{transform_indices = @transform_0, window_bounds = array<i64: 2, 128>}, {pipeline_mode = #tpu.pipeline_mode<synchronous>, transform_indices = @transform_1, window_bounds = array<i64: 264, 128>}, {pipeline_mode = #tpu.pipeline_mode<synchronous>, transform_indices = @transform_2, window_bounds = array<i64: 264, 1>}, {transform_indices = @transform_3, window_bounds = array<i64: 8, 128>}]} {
    %c0 = arith.constant 0 : index
    %c0_0 = arith.constant 0 : index
    %0 = vector.load %arg1[%c0, %c0_0] : memref<2x128xf32, #tpu.memory_space<vmem>>, vector<2x128xf32>
    %c0_1 = arith.constant 0 : index
    %c0_2 = arith.constant 0 : index
    %1 = vector.load %arg3[%c0_1, %c0_2] : memref<264x1xf32, #tpu.memory_space<vmem>>, vector<128x1xf32>
    %c0_3 = arith.constant 0 : index
    %c0_4 = arith.constant 0 : index
    %2 = vector.load %arg2[%c0_3, %c0_4] : memref<264x128xf32, #tpu.memory_space<vmem>>, vector<128x2xf32>
    %3 = vector.extract_strided_slice %2 {offsets = [0, 0], sizes = [128, 1], strides = [1, 1]} : vector<128x2xf32> to vector<128x1xf32>
    %4 = vector.extract_strided_slice %0 {offsets = [0, 0], sizes = [1, 128], strides = [1, 1]} : vector<2x128xf32> to vector<1x128xf32>
    %5 = vector.broadcast %3 : vector<128x1xf32> to vector<128x128xf32>
    %6 = vector.broadcast %4 : vector<1x128xf32> to vector<128x128xf32>
    %7 = arith.mulf %5, %6 : vector<128x128xf32>
    %8 = vector.broadcast %1 : vector<128x1xf32> to vector<128x128xf32>
    %9 = arith.addf %8, %7 : vector<128x128xf32>
    %10 = vector.extract_strided_slice %2 {offsets = [0, 1], sizes = [128, 1], strides = [1, 1]} : vector<128x2xf32> to vector<128x1xf32>
    %11 = vector.extract_strided_slice %0 {offsets = [1, 0], sizes = [1, 128], strides = [1, 1]} : vector<2x128xf32> to vector<1x128xf32>
    %12 = vector.broadcast %10 : vector<128x1xf32> to vector<128x128xf32>
    %13 = vector.broadcast %11 : vector<1x128xf32> to vector<128x128xf32>
    %14 = arith.mulf %12, %13 : vector<128x128xf32>
    %15 = arith.addf %9, %14 : vector<128x128xf32>
    %cst = arith.constant 0.000000e+00 : f32
    %16 = vector.broadcast %cst : f32 to vector<128x128xf32>
    %17 = arith.maximumf %15, %16 : vector<128x128xf32>
    %c128 = arith.constant 128 : index
    %c0_5 = arith.constant 0 : index
    %18 = vector.load %arg2[%c128, %c0_5] : memref<264x128xf32, #tpu.memory_space<vmem>>, vector<128x128xf32>
    %cst_6 = arith.constant dense<0.000000e+00> : vector<128x128xf32>
    %19 = tpu.matmul %18, %17, %cst_6 {dimension_numbers = #tpu.dot_dimension_numbers<[1], [0], [0], [1], [0, 0, 1, 1], [], []>} : vector<128x128xf32>, vector<128x128xf32>, vector<128x128xf32> -> vector<128x128xf32>
    %c128_7 = arith.constant 128 : index
    %c0_8 = arith.constant 0 : index
    %20 = vector.load %arg3[%c128_7, %c0_8] : memref<264x1xf32, #tpu.memory_space<vmem>>, vector<128x1xf32>
    %21 = vector.broadcast %20 : vector<128x1xf32> to vector<128x128xf32>
    %22 = arith.addf %19, %21 : vector<128x128xf32>
    %cst_9 = arith.constant 0.000000e+00 : f32
    %23 = vector.broadcast %cst_9 : f32 to vector<128x128xf32>
    %24 = arith.maximumf %22, %23 : vector<128x128xf32>
    %c256 = arith.constant 256 : index
    %c0_10 = arith.constant 0 : index
    %25 = vector.load %arg2[%c256, %c0_10] : memref<264x128xf32, #tpu.memory_space<vmem>>, vector<8x128xf32>
    %cst_11 = arith.constant dense<0.000000e+00> : vector<8x128xf32>
    %26 = tpu.matmul %25, %24, %cst_11 {dimension_numbers = #tpu.dot_dimension_numbers<[1], [0], [0], [1], [0, 0, 1, 1], [], []>} : vector<8x128xf32>, vector<128x128xf32>, vector<8x128xf32> -> vector<8x128xf32>
    %c256_12 = arith.constant 256 : index
    %c0_13 = arith.constant 0 : index
    %27 = vector.load %arg3[%c256_12, %c0_13] : memref<264x1xf32, #tpu.memory_space<vmem>>, vector<8x1xf32>
    %28 = vector.broadcast %27 : vector<8x1xf32> to vector<8x128xf32>
    %29 = arith.addf %26, %28 : vector<8x128xf32>
    %c0_14 = arith.constant 0 : index
    %c0_15 = arith.constant 0 : index
    %30 = vector.load %arg4[%c0_14, %c0_15] : memref<8x128xf32, #tpu.memory_space<vmem>>, vector<8x128xf32>
    tpu.vector_store %arg4[%c0_14, %c0_15], %29 {strides = array<i32>} : memref<8x128xf32, #tpu.memory_space<vmem>>, vector<8x128xf32>,
    return
  }
  func.func @transform_0(%arg0: i32) -> (i32, i32) {
    %c0_i32 = arith.constant 0 : i32
    %c0_i32_0 = arith.constant 0 : i32
    return %c0_i32, %arg0 : i32, i32
  }
  func.func @transform_1(%arg0: i32) -> (i32, i32) {
    %c0_i32 = arith.constant 0 : i32
    %c0_i32_0 = arith.constant 0 : i32
    %c0_i32_1 = arith.constant 0 : i32
    return %c0_i32, %c0_i32_0 : i32, i32
  }
  func.func @transform_2(%arg0: i32) -> (i32, i32) {
    %c0_i32 = arith.constant 0 : i32
    %c0_i32_0 = arith.constant 0 : i32
    %c0_i32_1 = arith.constant 0 : i32
    return %c0_i32, %c0_i32_0 : i32, i32
  }
  func.func @transform_3(%arg0: i32) -> (i32, i32) {
    %c0_i32 = arith.constant 0 : i32
    %c0_i32_0 = arith.constant 0 : i32
    return %c0_i32, %arg0 : i32, i32
  }
}

</mosaic_0001>

<llo_original>
// kernel: tpu_custom_call.1
$region0: #{tpu_custom_call.1}
  #allocation0 [shape = 'u32[]', space=smem, size = 0x4, offset = 0x4, fixed_abs, tag = 'smem constant byte address 0x4 - core index']
  #allocation1 [shape = 'u32[144,128]{1,0:T(1,128)}', space=vmem, size = 0x12000, scoped, tag = 'internal scratch']
  %s0 = inlined_call_operand.vmem [shape: f32[2,256], index: 0, kind: input, shape index: {}]
  %s1 = inlined_call_operand.vmem [shape: f32[264,128], index: 1, kind: input, shape index: {}]
  %s2 = inlined_call_operand.vmem [shape: f32[264,1], index: 2, kind: input, shape index: {}]
  %s3 = inlined_call_operand.hbm [shape: f32[8,256], index: 3, kind: output, shape index: {}]
  %s4 = sld [smem:[#allocation0]]
  $region45: #{tpu_custom_call.1} parent=0
    _
  %s6 = ssub.s32 1, %s4
  %s7 = scalar_select 0, %s6, %s4
  $region1: #{tpu_custom_call.1} parent=0
    #allocation2 [shape = 'u8[8192]{0}', space=vmem, size = 0x2000, scoped, tag = 'output window, operand 0']
    #allocation3 [shape = 's32[2]{0}', space=sflag, size = 0x8, scoped, tag = 'scoped memory for tpu_custom_call.1']
    %8 = vsyncpa [#allocation3], 0
    %s9 = scalar_lea.sflag [#allocation3], 1
    %10 = vsyncpa %s9, 0
    loop: start=0, step=1, limit=4
    $region2: #{tpu_custom_call.1} parent=1 // loop_pre_header
      _
    $region3: #{tpu_custom_call.1} parent=1 // loop_header
      %s12 = sphi 0, %s16
      %p13 = scmp.ge.s32.totalorder %s12, 4
      %s22 = sphi 0, %s24
      %s25 = sphi 0, %s22
      %s26 = sphi 0, %s25
      %s42 = sphi 0, %s26
      %s46 = sphi 0, %s46
      %s48 = sphi 0, %s46
      %s49 = sphi 0, %s48
      %s63 = sphi 0, %s49
      %s67 = sphi 0, %s67
      %s69 = sphi 0, %s67
      %s70 = sphi 0, %s69
      %s84 = sphi 0, %s70
      %s90 = sphi 0, %s92
      %s93 = sphi 0, %s90
      %s94 = sphi 0, %s93
      %s110 = sphi 0, %s94
    $region4: #{tpu_custom_call.1} parent=1 // loop_header_branch
      %15 = sbr.rel (%p13) target = $region8
    $region5: #{tpu_custom_call.1} parent=1 // loop_body
      %s17 = ssub.s32 %s12, 1
      %s18 = ssub.s32 %s12, 2
      %s19 = sadd.s32 %s12, 1
      %s20 = ssub.s32 %s12, %s19
      %p21 = scmp.eq.s32.totalorder %s20, 0
      %s23 = sadd.s32 %s22, 1
      %s24 = scalar_select %p21, %s22, %s23
      %p27 = pneg %p21
      %p28 = scmp.eq.s32.totalorder %s12, 1
      %p29 = por %p27, %p28
      %p30 = scmp.ne.s32.totalorder %s22, %s25
      %p31 = scmp.eq.s32.totalorder %s12, 0
      %p32 = por %p30, %p31
      %p33 = scmp.ne.s32.totalorder %s22, %s25
      %p34 = scmp.eq.s32.totalorder %s17, 1
      %p35 = por %p33, %p34
      %p36 = scmp.ne.s32.totalorder %s25, %s26
      %p37 = scmp.eq.s32.totalorder %s17, 0
      %p38 = por %p36, %p37
      %p39 = scmp.ne.s32.totalorder %s25, %s26
      %p40 = scmp.eq.s32.totalorder %s18, 1
      %p41 = por %p39, %p40
      %p43 = scmp.ne.s32.totalorder %s26, %s42
      %p44 = scmp.eq.s32.totalorder %s18, 0
      %p45 = por %p43, %p44
      %s47 = sadd.s32 %s46, 1
      %p50 = scmp.eq.s32.totalorder %s12, 1
      %p51 = scmp.ne.s32.totalorder %s46, %s48
      %p52 = scmp.eq.s32.totalorder %s12, 0
      %p53 = por %p51, %p52
      %p54 = scmp.ne.s32.totalorder %s46, %s48
      %p55 = scmp.eq.s32.totalorder %s17, 1
      %p56 = por %p54, %p55
      %p57 = scmp.ne.s32.totalorder %s48, %s49
      %p58 = scmp.eq.s32.totalorder %s17, 0
      %p59 = por %p57, %p58
      %p60 = scmp.ne.s32.totalorder %s48, %s49
      %p61 = scmp.eq.s32.totalorder %s18, 1
      %p62 = por %p60, %p61
      %p64 = scmp.ne.s32.totalorder %s49, %s63
      %p65 = scmp.eq.s32.totalorder %s18, 0
      %p66 = por %p64, %p65
      %s68 = sadd.s32 %s67, 1
      %p71 = scmp.eq.s32.totalorder %s12, 1
      %p72 = scmp.ne.s32.totalorder %s67, %s69
      %p73 = scmp.eq.s32.totalorder %s12, 0
      %p74 = por %p72, %p73
      %p75 = scmp.ne.s32.totalorder %s67, %s69
      %p76 = scmp.eq.s32.totalorder %s17, 1
      %p77 = por %p75, %p76
      %p78 = scmp.ne.s32.totalorder %s69, %s70
      %p79 = scmp.eq.s32.totalorder %s17, 0
      %p80 = por %p78, %p79
      %p81 = scmp.ne.s32.totalorder %s69, %s70
      %p82 = scmp.eq.s32.totalorder %s18, 1
      %p83 = por %p81, %p82
      %p85 = scmp.ne.s32.totalorder %s70, %s84
      %p86 = scmp.eq.s32.totalorder %s18, 0
      %p87 = por %p85, %p86
      %s88 = ssub.s32 %s12, %s19
      %p89 = scmp.eq.s32.totalorder %s88, 0
      %s91 = sadd.s32 %s90, 1
      %s92 = scalar_select %p89, %s90, %s91
      %p95 = pneg %p89
      %p96 = scmp.eq.s32.totalorder %s12, 1
      %p97 = por %p95, %p96
      %p98 = scmp.ne.s32.totalorder %s90, %s93
      %p99 = scmp.eq.s32.totalorder %s12, 0
      %p100 = por %p98, %p99
      %p101 = scmp.ne.s32.totalorder %s90, %s93
      %p102 = scmp.eq.s32.totalorder %s17, 1
      %p103 = por %p101, %p102
      %p104 = scmp.ne.s32.totalorder %s93, %s94
      %p105 = scmp.eq.s32.totalorder %s17, 0
      %p106 = por %p104, %p105
      %p107 = scmp.ne.s32.totalorder %s93, %s94
      %p108 = scmp.eq.s32.totalorder %s18, 1
      %p109 = por %p107, %p108
      %p111 = scmp.ne.s32.totalorder %s94, %s110
      %p112 = scmp.eq.s32.totalorder %s18, 0
      %p113 = por %p111, %p112
      %p114 = scmp.le.s32.totalorder 1, %s12
      %p115 = scmp.lt.s32.totalorder %s12, 3
      %p116 = pnand %p114, %p115
      %p117 = pneg %p116
      // Predicated region
      $region9: #{tpu_custom_call.1} parent=5 // pred_check
        _
      $region10: #{tpu_custom_call.1} parent=5 // pred_check_branch
        %119 = sbr.rel (%p116) target = $region12
      $region11: #{tpu_custom_call.1} parent=5 // pred_region
        %s120 = ssub.s32 %s12, 1
        // Predicated region
        $region13: #{tpu_custom_call.1} parent=11 // pred_check
          %p121 = pneg %p59
        $region14: #{tpu_custom_call.1} parent=11 // pred_check_branch
          %123 = sbr.rel (%p121) target = $region16
        $region15: #{tpu_custom_call.1} parent=11 // pred_region
          _
        $region16: #{tpu_custom_call.1} parent=11 // pred_fallthru
          _
        // Predicated region
        $region17: #{tpu_custom_call.1} parent=11 // pred_check
          %p124 = pneg %p80
        $region18: #{tpu_custom_call.1} parent=11 // pred_check_branch
          %126 = sbr.rel (%p124) target = $region20
        $region19: #{tpu_custom_call.1} parent=11 // pred_region
          _
        $region20: #{tpu_custom_call.1} parent=11 // pred_fallthru
          _
      $region12: #{tpu_custom_call.1} parent=5 // pred_fallthru
        _
      %p127 = scmp.lt.s32.totalorder %s12, 2
      // Predicated region
      $region21: #{tpu_custom_call.1} parent=5 // pred_check
        %p128 = pneg %p127
      $region22: #{tpu_custom_call.1} parent=5 // pred_check_branch
        %130 = sbr.rel (%p128) target = $region24
      $region23: #{tpu_custom_call.1} parent=5 // pred_region
        // Predicated region
        $region25: #{tpu_custom_call.1} parent=23 // pred_check
          %p131 = pneg %p32
        $region26: #{tpu_custom_call.1} parent=23 // pred_check_branch
          %133 = sbr.rel (%p131) target = $region28
        $region27: #{tpu_custom_call.1} parent=23 // pred_region
          %p134 = scmp.lt.s32.totalorder %s12, 1
          %s135 = scalar_select %p134, %s12, 1
          %s136 = smul.addr %s135, 2
          %s137 = scalar_lea.vmem %s0, %s136
        $region28: #{tpu_custom_call.1} parent=23 // pred_fallthru
          _
      $region24: #{tpu_custom_call.1} parent=5 // pred_fallthru
        _
      %p138 = scmp.le.s32.totalorder 1, %s12
      %p139 = scmp.lt.s32.totalorder %s12, 3
      %p140 = pnand %p138, %p139
      %p141 = pneg %p140
      // Predicated region
      $region29: #{tpu_custom_call.1} parent=5 // pred_check
        _
      $region30: #{tpu_custom_call.1} parent=5 // pred_check_branch
        %143 = sbr.rel (%p140) target = $region32
      $region31: #{tpu_custom_call.1} parent=5 // pred_region
        %s144 = ssub.s32 %s12, 1
        %p145 = scmp.lt.s32.totalorder %s17, 1
        %s146 = scalar_select %p145, %s17, 1
        %s147 = smul.addr %s146, 2
        %s148 = scalar_lea.vmem %s0, %s147
        %p149 = pneg %p38
        %p150 = pneg %p35
        %p151 = pneg %p59
        %p152 = pneg %p56
        %p153 = pneg %p80
        %p154 = pneg %p77
        %p155 = pneg %p106
        %p156 = pneg %p103
        %s157 = sand.u32 %s93, 1
        %s158 = scalar_lea.sflag [#allocation3], %s157
        %s159 = sand.u32 %s93, 1
        %s160 = smul.addr %s159, 8
        %s161 = scalar_lea.vmem [#allocation2], %s160
        %p162 = scmp.lt.s32.totalorder %s17, 1
        %s163 = scalar_select %p162, %s17, 1
        %s164 = smul.addr %s163, 2
        %s165 = scalar_lea.vmem %s0, %s164
        %v166 = vld [vmem:[%s165] sm:$0x3]
        %v167 = vld [vmem:[%s2] sm:$0xff]
        %v168 = vld [vmem:[%s2 + $0x8] sm:$0xff]
        %v169 = vld [vmem:[%s2 + $0x10] sm:$0xff]
        %v170 = vld [vmem:[%s2 + $0x18] sm:$0xff]
        %v171 = vld [vmem:[%s2 + $0x20] sm:$0xff]
        %v172 = vld [vmem:[%s2 + $0x28] sm:$0xff]
        %v173 = vld [vmem:[%s2 + $0x30] sm:$0xff]
        %v174 = vld [vmem:[%s2 + $0x38] sm:$0xff]
        %v175 = vld [vmem:[%s2 + $0x40] sm:$0xff]
        %v176 = vld [vmem:[%s2 + $0x48] sm:$0xff]
        %v177 = vld [vmem:[%s2 + $0x50] sm:$0xff]
        %v178 = vld [vmem:[%s2 + $0x58] sm:$0xff]
        %v179 = vld [vmem:[%s2 + $0x60] sm:$0xff]
        %v180 = vld [vmem:[%s2 + $0x68] sm:$0xff]
        %v181 = vld [vmem:[%s2 + $0x70] sm:$0xff]
        %v182 = vld [vmem:[%s2 + $0x78] sm:$0xff]
        %v183 = vld [vmem:[%s1] sm:$0xff]
        %v184 = vld [vmem:[%s1 + $0x8] sm:$0xff]
        %v185 = vld [vmem:[%s1 + $0x10] sm:$0xff]
        %v186 = vld [vmem:[%s1 + $0x18] sm:$0xff]
        %v187 = vld [vmem:[%s1 + $0x20] sm:$0xff]
        %v188 = vld [vmem:[%s1 + $0x28] sm:$0xff]
        %v189 = vld [vmem:[%s1 + $0x30] sm:$0xff]
        %v190 = vld [vmem:[%s1 + $0x38] sm:$0xff]
        %v191 = vld [vmem:[%s1 + $0x40] sm:$0xff]
        %v192 = vld [vmem:[%s1 + $0x48] sm:$0xff]
        %v193 = vld [vmem:[%s1 + $0x50] sm:$0xff]
        %v194 = vld [vmem:[%s1 + $0x58] sm:$0xff]
        %v195 = vld [vmem:[%s1 + $0x60] sm:$0xff]
        %v196 = vld [vmem:[%s1 + $0x68] sm:$0xff]
        %v197 = vld [vmem:[%s1 + $0x70] sm:$0xff]
        %v198 = vld [vmem:[%s1 + $0x78] sm:$0xff]
        %200 = vset.pattern.permute.xlu0 0
        %201 = vperm.xlu0 %200, %v183
        %v202 = vpop.permute.xlu0 %201
        %205 = vset.pattern.permute.xlu0 0
        %206 = vperm.xlu0 %205, %v184
        %v207 = vpop.permute.xlu0 %206
        %210 = vset.pattern.permute.xlu0 0
        %211 = vperm.xlu0 %210, %v185
        %v212 = vpop.permute.xlu0 %211
        %215 = vset.pattern.permute.xlu0 0
        %216 = vperm.xlu0 %215, %v186
        %v217 = vpop.permute.xlu0 %216
        %220 = vset.pattern.permute.xlu0 0
        %221 = vperm.xlu0 %220, %v187
        %v222 = vpop.permute.xlu0 %221
        %225 = vset.pattern.permute.xlu0 0
        %226 = vperm.xlu0 %225, %v188
        %v227 = vpop.permute.xlu0 %226
        %230 = vset.pattern.permute.xlu0 0
        %231 = vperm.xlu0 %230, %v189
        %v232 = vpop.permute.xlu0 %231
        %235 = vset.pattern.permute.xlu0 0
        %236 = vperm.xlu0 %235, %v190
        %v237 = vpop.permute.xlu0 %236
        %240 = vset.pattern.permute.xlu0 0
        %241 = vperm.xlu0 %240, %v191
        %v242 = vpop.permute.xlu0 %241
        %245 = vset.pattern.permute.xlu0 0
        %246 = vperm.xlu0 %245, %v192
        %v247 = vpop.permute.xlu0 %246
        %250 = vset.pattern.permute.xlu0 0
        %251 = vperm.xlu0 %250, %v193
        %v252 = vpop.permute.xlu0 %251
        %255 = vset.pattern.permute.xlu0 0
        %256 = vperm.xlu0 %255, %v194
        %v257 = vpop.permute.xlu0 %256
        %260 = vset.pattern.permute.xlu0 0
        %261 = vperm.xlu0 %260, %v195
        %v262 = vpop.permute.xlu0 %261
        %265 = vset.pattern.permute.xlu0 0
        %266 = vperm.xlu0 %265, %v196
        %v267 = vpop.permute.xlu0 %266
        %270 = vset.pattern.permute.xlu0 0
        %271 = vperm.xlu0 %270, %v197
        %v272 = vpop.permute.xlu0 %271
        %275 = vset.pattern.permute.xlu0 0
        %276 = vperm.xlu0 %275, %v198
        %v277 = vpop.permute.xlu0 %276
        %v279 = vlaneseq
        %v280 = vshrl.u32 %v279, 7
        %v281 = vsub.s32 0, %v280
        %v282 = vrot.slane %v166, %v281
        %v283 = vmul.f32 %v202, %v282
        %v284 = vmul.f32 %v207, %v282
        %v285 = vmul.f32 %v212, %v282
        %v286 = vmul.f32 %v217, %v282
        %v287 = vmul.f32 %v222, %v282
        %v288 = vmul.f32 %v227, %v282
        %v289 = vmul.f32 %v232, %v282
        %v290 = vmul.f32 %v237, %v282
        %v291 = vmul.f32 %v242, %v282
        %v292 = vmul.f32 %v247, %v282
        %v293 = vmul.f32 %v252, %v282
        %v294 = vmul.f32 %v257, %v282
        %v295 = vmul.f32 %v262, %v282
        %v296 = vmul.f32 %v267, %v282
        %v297 = vmul.f32 %v272, %v282
        %v298 = vmul.f32 %v277, %v282
        %300 = vset.pattern.permute.xlu0 0
        %301 = vperm.xlu0 %300, %v167
        %v302 = vpop.permute.xlu0 %301
        %305 = vset.pattern.permute.xlu0 0
        %306 = vperm.xlu0 %305, %v168
        %v307 = vpop.permute.xlu0 %306
        %310 = vset.pattern.permute.xlu0 0
        %311 = vperm.xlu0 %310, %v169
        %v312 = vpop.permute.xlu0 %311
        %315 = vset.pattern.permute.xlu0 0
        %316 = vperm.xlu0 %315, %v170
        %v317 = vpop.permute.xlu0 %316
        %320 = vset.pattern.permute.xlu0 0
        %321 = vperm.xlu0 %320, %v171
        %v322 = vpop.permute.xlu0 %321
        %325 = vset.pattern.permute.xlu0 0
        %326 = vperm.xlu0 %325, %v172
        %v327 = vpop.permute.xlu0 %326
        %330 = vset.pattern.permute.xlu0 0
        %331 = vperm.xlu0 %330, %v173
        %v332 = vpop.permute.xlu0 %331
        %335 = vset.pattern.permute.xlu0 0
        %336 = vperm.xlu0 %335, %v174
        %v337 = vpop.permute.xlu0 %336
        %340 = vset.pattern.permute.xlu0 0
        %341 = vperm.xlu0 %340, %v175
        %v342 = vpop.permute.xlu0 %341
        %345 = vset.pattern.permute.xlu0 0
        %346 = vperm.xlu0 %345, %v176
        %v347 = vpop.permute.xlu0 %346
        %350 = vset.pattern.permute.xlu0 0
        %351 = vperm.xlu0 %350, %v177
        %v352 = vpop.permute.xlu0 %351
        %355 = vset.pattern.permute.xlu0 0
        %356 = vperm.xlu0 %355, %v178
        %v357 = vpop.permute.xlu0 %356
        %360 = vset.pattern.permute.xlu0 0
        %361 = vperm.xlu0 %360, %v179
        %v362 = vpop.permute.xlu0 %361
        %365 = vset.pattern.permute.xlu0 0
        %366 = vperm.xlu0 %365, %v180
        %v367 = vpop.permute.xlu0 %366
        %370 = vset.pattern.permute.xlu0 0
        %371 = vperm.xlu0 %370, %v181
        %v372 = vpop.permute.xlu0 %371
        %375 = vset.pattern.permute.xlu0 0
        %376 = vperm.xlu0 %375, %v182
        %v377 = vpop.permute.xlu0 %376
        %v379 = vadd.f32 %v302, %v283
        %v380 = vadd.f32 %v307, %v284
        %v381 = vadd.f32 %v312, %v285
        %v382 = vadd.f32 %v317, %v286
        %v383 = vadd.f32 %v322, %v287
        %v384 = vadd.f32 %v327, %v288
        %v385 = vadd.f32 %v332, %v289
        %v386 = vadd.f32 %v337, %v290
        %v387 = vadd.f32 %v342, %v291
        %v388 = vadd.f32 %v347, %v292
        %v389 = vadd.f32 %v352, %v293
        %v390 = vadd.f32 %v357, %v294
        %v391 = vadd.f32 %v362, %v295
        %v392 = vadd.f32 %v367, %v296
        %v393 = vadd.f32 %v372, %v297
        %v394 = vadd.f32 %v377, %v298
        %395 = vset.pattern.permute.xlu0 1
        %396 = vperm.xlu0 %395, %v183
        %v397 = vpop.permute.xlu0 %396
        %399 = vset.pattern.permute.xlu0 1
        %400 = vperm.xlu0 %399, %v184
        %v401 = vpop.permute.xlu0 %400
        %403 = vset.pattern.permute.xlu0 1
        %404 = vperm.xlu0 %403, %v185
        %v405 = vpop.permute.xlu0 %404
        %407 = vset.pattern.permute.xlu0 1
        %408 = vperm.xlu0 %407, %v186
        %v409 = vpop.permute.xlu0 %408
        %411 = vset.pattern.permute.xlu0 1
        %412 = vperm.xlu0 %411, %v187
        %v413 = vpop.permute.xlu0 %412
        %415 = vset.pattern.permute.xlu0 1
        %416 = vperm.xlu0 %415, %v188
        %v417 = vpop.permute.xlu0 %416
        %419 = vset.pattern.permute.xlu0 1
        %420 = vperm.xlu0 %419, %v189
        %v421 = vpop.permute.xlu0 %420
        %423 = vset.pattern.permute.xlu0 1
        %424 = vperm.xlu0 %423, %v190
        %v425 = vpop.permute.xlu0 %424
        %427 = vset.pattern.permute.xlu0 1
        %428 = vperm.xlu0 %427, %v191
        %v429 = vpop.permute.xlu0 %428
        %431 = vset.pattern.permute.xlu0 1
        %432 = vperm.xlu0 %431, %v192
        %v433 = vpop.permute.xlu0 %432
        %435 = vset.pattern.permute.xlu0 1
        %436 = vperm.xlu0 %435, %v193
        %v437 = vpop.permute.xlu0 %436
        %439 = vset.pattern.permute.xlu0 1
        %440 = vperm.xlu0 %439, %v194
        %v441 = vpop.permute.xlu0 %440
        %443 = vset.pattern.permute.xlu0 1
        %444 = vperm.xlu0 %443, %v195
        %v445 = vpop.permute.xlu0 %444
        %447 = vset.pattern.permute.xlu0 1
        %448 = vperm.xlu0 %447, %v196
        %v449 = vpop.permute.xlu0 %448
        %451 = vset.pattern.permute.xlu0 1
        %452 = vperm.xlu0 %451, %v197
        %v453 = vpop.permute.xlu0 %452
        %455 = vset.pattern.permute.xlu0 1
        %456 = vperm.xlu0 %455, %v198
        %v457 = vpop.permute.xlu0 %456
        %v459 = vlaneseq
        %v460 = vshrl.u32 %v459, 7
        %v461 = vsub.s32 1, %v460
        %v462 = vrot.slane %v166, %v461
        %v463 = vmul.f32 %v397, %v462
        %v464 = vmul.f32 %v401, %v462
        %v465 = vmul.f32 %v405, %v462
        %v466 = vmul.f32 %v409, %v462
        %v467 = vmul.f32 %v413, %v462
        %v468 = vmul.f32 %v417, %v462
        %v469 = vmul.f32 %v421, %v462
        %v470 = vmul.f32 %v425, %v462
        %v471 = vmul.f32 %v429, %v462
        %v472 = vmul.f32 %v433, %v462
        %v473 = vmul.f32 %v437, %v462
        %v474 = vmul.f32 %v441, %v462
        %v475 = vmul.f32 %v445, %v462
        %v476 = vmul.f32 %v449, %v462
        %v477 = vmul.f32 %v453, %v462
        %v478 = vmul.f32 %v457, %v462
        %v479 = vadd.f32 %v379, %v463
        %v480 = vadd.f32 %v380, %v464
        %v481 = vadd.f32 %v381, %v465
        %v482 = vadd.f32 %v382, %v466
        %v483 = vadd.f32 %v383, %v467
        %v484 = vadd.f32 %v384, %v468
        %v485 = vadd.f32 %v385, %v469
        %v486 = vadd.f32 %v386, %v470
        %v487 = vadd.f32 %v387, %v471
        %v488 = vadd.f32 %v388, %v472
        %v489 = vadd.f32 %v389, %v473
        %v490 = vadd.f32 %v390, %v474
        %v491 = vadd.f32 %v391, %v475
        %v492 = vadd.f32 %v392, %v476
        %v493 = vadd.f32 %v393, %v477
        %v494 = vadd.f32 %v394, %v478
        %v495 = vmax.f32 %v479, 0.0
        %v496 = vmax.f32 %v480, 0.0
        %v497 = vmax.f32 %v481, 0.0
        %v498 = vmax.f32 %v482, 0.0
        %v499 = vmax.f32 %v483, 0.0
        %v500 = vmax.f32 %v484, 0.0
        %v501 = vmax.f32 %v485, 0.0
        %v502 = vmax.f32 %v486, 0.0
        %v503 = vmax.f32 %v487, 0.0
        %v504 = vmax.f32 %v488, 0.0
        %v505 = vmax.f32 %v489, 0.0
        %v506 = vmax.f32 %v490, 0.0
        %v507 = vmax.f32 %v491, 0.0
        %v508 = vmax.f32 %v492, 0.0
        %v509 = vmax.f32 %v493, 0.0
        %v510 = vmax.f32 %v494, 0.0
        %v511 = vld [vmem:[%s1 + $0x80] sm:$0xff]
        %v512 = vld [vmem:[%s1 + $0x88] sm:$0xff]
        %v513 = vld [vmem:[%s1 + $0x90] sm:$0xff]
        %v514 = vld [vmem:[%s1 + $0x98] sm:$0xff]
        %v515 = vld [vmem:[%s1 + $0xa0] sm:$0xff]
        %v516 = vld [vmem:[%s1 + $0xa8] sm:$0xff]
        %v517 = vld [vmem:[%s1 + $0xb0] sm:$0xff]
        %v518 = vld [vmem:[%s1 + $0xb8] sm:$0xff]
        %v519 = vld [vmem:[%s1 + $0xc0] sm:$0xff]
        %v520 = vld [vmem:[%s1 + $0xc8] sm:$0xff]
        %v521 = vld [vmem:[%s1 + $0xd0] sm:$0xff]
        %v522 = vld [vmem:[%s1 + $0xd8] sm:$0xff]
        %v523 = vld [vmem:[%s1 + $0xe0] sm:$0xff]
        %v524 = vld [vmem:[%s1 + $0xe8] sm:$0xff]
        %v525 = vld [vmem:[%s1 + $0xf0] sm:$0xff]
        %v526 = vld [vmem:[%s1 + $0xf8] sm:$0xff]
        %v527 = vld [vmem:[%s2 + $0x80] sm:$0xff]
        %v528 = vld [vmem:[%s2 + $0x88] sm:$0xff]
        %v529 = vld [vmem:[%s2 + $0x90] sm:$0xff]
        %v530 = vld [vmem:[%s2 + $0x98] sm:$0xff]
        %v531 = vld [vmem:[%s2 + $0xa0] sm:$0xff]
        %v532 = vld [vmem:[%s2 + $0xa8] sm:$0xff]
        %v533 = vld [vmem:[%s2 + $0xb0] sm:$0xff]
        %v534 = vld [vmem:[%s2 + $0xb8] sm:$0xff]
        %v535 = vld [vmem:[%s2 + $0xc0] sm:$0xff]
        %v536 = vld [vmem:[%s2 + $0xc8] sm:$0xff]
        %v537 = vld [vmem:[%s2 + $0xd0] sm:$0xff]
        %v538 = vld [vmem:[%s2 + $0xd8] sm:$0xff]
        %v539 = vld [vmem:[%s2 + $0xe0] sm:$0xff]
        %v540 = vld [vmem:[%s2 + $0xe8] sm:$0xff]
        %v541 = vld [vmem:[%s2 + $0xf0] sm:$0xff]
        %v542 = vld [vmem:[%s2 + $0xf8] sm:$0xff]
        %544 = vset.pattern.permute.xlu0 0
        %545 = vperm.xlu0 %544, %v527
        %v546 = vpop.permute.xlu0 %545
        %549 = vset.pattern.permute.xlu0 0
        %550 = vperm.xlu0 %549, %v528
        %v551 = vpop.permute.xlu0 %550
        %554 = vset.pattern.permute.xlu0 0
        %555 = vperm.xlu0 %554, %v529
        %v556 = vpop.permute.xlu0 %555
        %559 = vset.pattern.permute.xlu0 0
        %560 = vperm.xlu0 %559, %v530
        %v561 = vpop.permute.xlu0 %560
        %564 = vset.pattern.permute.xlu0 0
        %565 = vperm.xlu0 %564, %v531
        %v566 = vpop.permute.xlu0 %565
        %569 = vset.pattern.permute.xlu0 0
        %570 = vperm.xlu0 %569, %v532
        %v571 = vpop.permute.xlu0 %570
        %574 = vset.pattern.permute.xlu0 0
        %575 = vperm.xlu0 %574, %v533
        %v576 = vpop.permute.xlu0 %575
        %579 = vset.pattern.permute.xlu0 0
        %580 = vperm.xlu0 %579, %v534
        %v581 = vpop.permute.xlu0 %580
        %584 = vset.pattern.permute.xlu0 0
        %585 = vperm.xlu0 %584, %v535
        %v586 = vpop.permute.xlu0 %585
        %589 = vset.pattern.permute.xlu0 0
        %590 = vperm.xlu0 %589, %v536
        %v591 = vpop.permute.xlu0 %590
        %594 = vset.pattern.permute.xlu0 0
        %595 = vperm.xlu0 %594, %v537
        %v596 = vpop.permute.xlu0 %595
        %599 = vset.pattern.permute.xlu0 0
        %600 = vperm.xlu0 %599, %v538
        %v601 = vpop.permute.xlu0 %600
        %604 = vset.pattern.permute.xlu0 0
        %605 = vperm.xlu0 %604, %v539
        %v606 = vpop.permute.xlu0 %605
        %609 = vset.pattern.permute.xlu0 0
        %610 = vperm.xlu0 %609, %v540
        %v611 = vpop.permute.xlu0 %610
        %614 = vset.pattern.permute.xlu0 0
        %615 = vperm.xlu0 %614, %v541
        %v616 = vpop.permute.xlu0 %615
        %619 = vset.pattern.permute.xlu0 0
        %620 = vperm.xlu0 %619, %v542
        %v621 = vpop.permute.xlu0 %620
        %623 = vmatprep.subr.mxu0 0.0
        %624 = vmatpush1.msra.mxu0 %v495
        %625 = vmatprep.subr.mxu0 0.0
        %626 = vmatpush1.msra.mxu0 %v496
        %627 = vmatprep.subr.mxu0 0.0
        %628 = vmatpush1.msra.mxu0 %v497
        %629 = vmatprep.subr.mxu0 0.0
        %630 = vmatpush1.msra.mxu0 %v498
        %631 = vmatprep.subr.mxu0 0.0
        %632 = vmatpush1.msra.mxu0 %v499
        %633 = vmatprep.subr.mxu0 0.0
        %634 = vmatpush1.msra.mxu0 %v500
        %635 = vmatprep.subr.mxu0 0.0
        %636 = vmatpush1.msra.mxu0 %v501
        %637 = vmatprep.subr.mxu0 0.0
        %638 = vmatpush1.msra.mxu0 %v502
        %639 = vmatprep.subr.mxu0 0.0
        %640 = vmatpush1.msra.mxu0 %v503
        %641 = vmatprep.subr.mxu0 0.0
        %642 = vmatpush1.msra.mxu0 %v504
        %643 = vmatprep.subr.mxu0 0.0
        %644 = vmatpush1.msra.mxu0 %v505
        %645 = vmatprep.subr.mxu0 0.0
        %646 = vmatpush1.msra.mxu0 %v506
        %647 = vmatprep.subr.mxu0 0.0
        %648 = vmatpush1.msra.mxu0 %v507
        %649 = vmatprep.subr.mxu0 0.0
        %650 = vmatpush1.msra.mxu0 %v508
        %651 = vmatprep.subr.mxu0 0.0
        %652 = vmatpush1.msra.mxu0 %v509
        %653 = vmatprep.subr.mxu0 0.0
        %654 = vmatpush1.msra.mxu0 %v510
        %655 = vmatprep.subr.mxu0 0.0
        %656 = vmatpush1.msra.mxu0 0.0
        %657 = vmatprep.subr.mxu0 0.0
        %658 = vmatpush1.msra.mxu0 0.0
        %659 = vmatprep.subr.mxu0 0.0
        %660 = vmatpush1.msra.mxu0 0.0
        %661 = vmatprep.subr.mxu0 0.0
        %662 = vmatpush1.msra.mxu0 0.0
        %663 = vmatprep.subr.mxu0 0.0
        %664 = vmatpush1.msra.mxu0 0.0
        %665 = vmatprep.subr.mxu0 0.0
        %666 = vmatpush1.msra.mxu0 0.0
        %667 = vmatprep.subr.mxu0 0.0
        %668 = vmatpush1.msra.mxu0 0.0
        %669 = vmatprep.subr.mxu0 0.0
        %670 = vmatpush1.msra.mxu0 0.0
        %671 = vmatprep.subr.mxu0 0.0
        %672 = vmatpush1.msra.mxu0 0.0
        %673 = vmatprep.subr.mxu0 0.0
        %674 = vmatpush1.msra.mxu0 0.0
        %675 = vmatprep.subr.mxu0 0.0
        %676 = vmatpush1.msra.mxu0 0.0
        %677 = vmatprep.subr.mxu0 0.0
        %678 = vmatpush1.msra.mxu0 0.0
        %679 = vmatprep.subr.mxu0 0.0
        %680 = vmatpush1.msra.mxu0 0.0
        %681 = vmatprep.subr.mxu0 0.0
        %682 = vmatpush1.msra.mxu0 0.0
        %683 = vmatprep.subr.mxu0 0.0
        %684 = vmatpush1.msra.mxu0 0.0
        %685 = vmatprep.subr.mxu0 0.0
        %686 = vmatpush1.msra.mxu0 0.0
        %687 = vmatprep.mubr.f32.mxu0 0.0
        %688 = vmatmul.mubr.f32.gmra.mrb[0].mxu0 %v511
        %v689 = vpop.f32.mrb[0].mxu0
        %v690 = vadd.f32 %v546, %v689
        %v691 = vpop.f32.mrb[0].mxu0
        %692 = vmatprep.mubr.f32.mxu0 0.0
        %693 = vmatmul.mubr.f32.gmra.mrb[0].mxu0 %v512
        %v694 = vpop.f32.mrb[0].mxu0
        %v695 = vadd.f32 %v551, %v694
        %v696 = vpop.f32.mrb[0].mxu0
        %697 = vmatprep.mubr.f32.mxu0 0.0
        %698 = vmatmul.mubr.f32.gmra.mrb[0].mxu0 %v513
        %v699 = vpop.f32.mrb[0].mxu0
        %v700 = vadd.f32 %v556, %v699
        %v701 = vpop.f32.mrb[0].mxu0
        %702 = vmatprep.mubr.f32.mxu0 0.0
        %703 = vmatmul.mubr.f32.gmra.mrb[0].mxu0 %v514
        %v704 = vpop.f32.mrb[0].mxu0
        %v705 = vadd.f32 %v561, %v704
        %v706 = vpop.f32.mrb[0].mxu0
        %707 = vmatprep.mubr.f32.mxu0 0.0
        %708 = vmatmul.mubr.f32.gmra.mrb[0].mxu0 %v515
        %v709 = vpop.f32.mrb[0].mxu0
        %v710 = vadd.f32 %v566, %v709
        %v711 = vpop.f32.mrb[0].mxu0
        %712 = vmatprep.mubr.f32.mxu0 0.0
        %713 = vmatmul.mubr.f32.gmra.mrb[0].mxu0 %v516
        %v714 = vpop.f32.mrb[0].mxu0
        %v715 = vadd.f32 %v571, %v714
        %v716 = vpop.f32.mrb[0].mxu0
        %717 = vmatprep.mubr.f32.mxu0 0.0
        %718 = vmatmul.mubr.f32.gmra.mrb[0].mxu0 %v517
        %v719 = vpop.f32.mrb[0].mxu0
        %v720 = vadd.f32 %v576, %v719
        %v721 = vpop.f32.mrb[0].mxu0
        %722 = vmatprep.mubr.f32.mxu0 0.0
        %723 = vmatmul.mubr.f32.gmra.mrb[0].mxu0 %v518
        %v724 = vpop.f32.mrb[0].mxu0
        %v725 = vadd.f32 %v581, %v724
        %v726 = vpop.f32.mrb[0].mxu0
        %727 = vmatprep.mubr.f32.mxu0 0.0
        %728 = vmatmul.mubr.f32.gmra.mrb[0].mxu0 %v519
        %v729 = vpop.f32.mrb[0].mxu0
        %v730 = vadd.f32 %v586, %v729
        %v731 = vpop.f32.mrb[0].mxu0
        %732 = vmatprep.mubr.f32.mxu0 0.0
        %733 = vmatmul.mubr.f32.gmra.mrb[0].mxu0 %v520
        %v734 = vpop.f32.mrb[0].mxu0
        %v735 = vadd.f32 %v591, %v734
        %v736 = vpop.f32.mrb[0].mxu0
        %737 = vmatprep.mubr.f32.mxu0 0.0
        %738 = vmatmul.mubr.f32.gmra.mrb[0].mxu0 %v521
        %v739 = vpop.f32.mrb[0].mxu0
        %v740 = vadd.f32 %v596, %v739
        %v741 = vpop.f32.mrb[0].mxu0
        %742 = vmatprep.mubr.f32.mxu0 0.0
        %743 = vmatmul.mubr.f32.gmra.mrb[0].mxu0 %v522
        %v744 = vpop.f32.mrb[0].mxu0
        %v745 = vadd.f32 %v601, %v744
        %v746 = vpop.f32.mrb[0].mxu0
        %747 = vmatprep.mubr.f32.mxu0 0.0
        %748 = vmatmul.mubr.f32.gmra.mrb[0].mxu0 %v523
        %v749 = vpop.f32.mrb[0].mxu0
        %v750 = vadd.f32 %v606, %v749
        %v751 = vpop.f32.mrb[0].mxu0
        %752 = vmatprep.mubr.f32.mxu0 0.0
        %753 = vmatmul.mubr.f32.gmra.mrb[0].mxu0 %v524
        %v754 = vpop.f32.mrb[0].mxu0
        %v755 = vadd.f32 %v611, %v754
        %v756 = vpop.f32.mrb[0].mxu0
        %757 = vmatprep.mubr.f32.mxu0 0.0
        %758 = vmatmul.mubr.f32.gmra.mrb[0].mxu0 %v525
        %v759 = vpop.f32.mrb[0].mxu0
        %v760 = vadd.f32 %v616, %v759
        %v761 = vpop.f32.mrb[0].mxu0
        %762 = vmatprep.mubr.f32.mxu0 0.0
        %763 = vmatmul.mubr.f32.gmra.mrb[0].mxu0 %v526
        %v764 = vpop.f32.mrb[0].mxu0
        %v765 = vadd.f32 %v621, %v764
        %v766 = vpop.f32.mrb[0].mxu0
        %767 = vdwg.mxu0
        %v768 = vmax.f32 %v690, 0.0
        %v769 = vmax.f32 %v695, 0.0
        %v770 = vmax.f32 %v700, 0.0
        %v771 = vmax.f32 %v705, 0.0
        %v772 = vmax.f32 %v710, 0.0
        %v773 = vmax.f32 %v715, 0.0
        %v774 = vmax.f32 %v720, 0.0
        %v775 = vmax.f32 %v725, 0.0
        %v776 = vmax.f32 %v730, 0.0
        %v777 = vmax.f32 %v735, 0.0
        %v778 = vmax.f32 %v740, 0.0
        %v779 = vmax.f32 %v745, 0.0
        %v780 = vmax.f32 %v750, 0.0
        %v781 = vmax.f32 %v755, 0.0
        %v782 = vmax.f32 %v760, 0.0
        %v783 = vmax.f32 %v765, 0.0
        %v784 = vld [vmem:[%s1 + $0x100] sm:$0xff]
        %v785 = vld [vmem:[%s2 + $0x100] sm:$0xff]
        %787 = vset.pattern.permute.xlu0 0
        %788 = vperm.xlu0 %787, %v785
        %v789 = vpop.permute.xlu0 %788
        %791 = vmatprep.subr.mxu0 0.0
        %792 = vmatpush1.msra.mxu0 %v768
        %793 = vmatprep.subr.mxu0 0.0
        %794 = vmatpush1.msra.mxu0 %v769
        %795 = vmatprep.subr.mxu0 0.0
        %796 = vmatpush1.msra.mxu0 %v770
        %797 = vmatprep.subr.mxu0 0.0
        %798 = vmatpush1.msra.mxu0 %v771
        %799 = vmatprep.subr.mxu0 0.0
        %800 = vmatpush1.msra.mxu0 %v772
        %801 = vmatprep.subr.mxu0 0.0
        %802 = vmatpush1.msra.mxu0 %v773
        %803 = vmatprep.subr.mxu0 0.0
        %804 = vmatpush1.msra.mxu0 %v774
        %805 = vmatprep.subr.mxu0 0.0
        %806 = vmatpush1.msra.mxu0 %v775
        %807 = vmatprep.subr.mxu0 0.0
        %808 = vmatpush1.msra.mxu0 %v776
        %809 = vmatprep.subr.mxu0 0.0
        %810 = vmatpush1.msra.mxu0 %v777
        %811 = vmatprep.subr.mxu0 0.0
        %812 = vmatpush1.msra.mxu0 %v778
        %813 = vmatprep.subr.mxu0 0.0
        %814 = vmatpush1.msra.mxu0 %v779
        %815 = vmatprep.subr.mxu0 0.0
        %816 = vmatpush1.msra.mxu0 %v780
        %817 = vmatprep.subr.mxu0 0.0
        %818 = vmatpush1.msra.mxu0 %v781
        %819 = vmatprep.subr.mxu0 0.0
        %820 = vmatpush1.msra.mxu0 %v782
        %821 = vmatprep.subr.mxu0 0.0
        %822 = vmatpush1.msra.mxu0 %v783
        %823 = vmatprep.subr.mxu0 0.0
        %824 = vmatpush1.msra.mxu0 0.0
        %825 = vmatprep.subr.mxu0 0.0
        %826 = vmatpush1.msra.mxu0 0.0
        %827 = vmatprep.subr.mxu0 0.0
        %828 = vmatpush1.msra.mxu0 0.0
        %829 = vmatprep.subr.mxu0 0.0
        %830 = vmatpush1.msra.mxu0 0.0
        %831 = vmatprep.subr.mxu0 0.0
        %832 = vmatpush1.msra.mxu0 0.0
        %833 = vmatprep.subr.mxu0 0.0
        %834 = vmatpush1.msra.mxu0 0.0
        %835 = vmatprep.subr.mxu0 0.0
        %836 = vmatpush1.msra.mxu0 0.0
        %837 = vmatprep.subr.mxu0 0.0
        %838 = vmatpush1.msra.mxu0 0.0
        %839 = vmatprep.subr.mxu0 0.0
        %840 = vmatpush1.msra.mxu0 0.0
        %841 = vmatprep.subr.mxu0 0.0
        %842 = vmatpush1.msra.mxu0 0.0
        %843 = vmatprep.subr.mxu0 0.0
        %844 = vmatpush1.msra.mxu0 0.0
        %845 = vmatprep.subr.mxu0 0.0
        %846 = vmatpush1.msra.mxu0 0.0
        %847 = vmatprep.subr.mxu0 0.0
        %848 = vmatpush1.msra.mxu0 0.0
        %849 = vmatprep.subr.mxu0 0.0
        %850 = vmatpush1.msra.mxu0 0.0
        %851 = vmatprep.subr.mxu0 0.0
        %852 = vmatpush1.msra.mxu0 0.0
        %853 = vmatprep.subr.mxu0 0.0
        %854 = vmatpush1.msra.mxu0 0.0
        %855 = vmatprep.mubr.f32.mxu0 0.0
        %856 = vmatmul.mubr.f32.gmra.mrb[0].mxu0 %v784
        %v857 = vpop.f32.mrb[0].mxu0
        %v858 = vadd.f32 %v789, %v857
        %v859 = vpop.f32.mrb[0].mxu0
        %860 = vdwg.mxu0
        %861 = vst [vmem:[%s161] sm:$0xff] %v858
        %s862 = sand.u32 %s93, 1
        %s863 = scalar_lea.sflag [#allocation3], %s862
        %s864 = sand.u32 %s93, 1
        %s865 = smul.addr %s864, 8
        %s866 = scalar_lea.vmem [#allocation2], %s865
        // Predicated region
        $region33: #{tpu_custom_call.1} parent=31 // pred_check
          %p867 = pneg %p103
        $region34: #{tpu_custom_call.1} parent=31 // pred_check_branch
          %869 = sbr.rel (%p867) target = $region36
        $region35: #{tpu_custom_call.1} parent=31 // pred_region
          %s871 = ssub.s32 128, 128
          %872 = vsyncadd %s863, %s871
          %s873 = smul.addr %s17, 128
          %s874 = scalar_lea.hbm %s3, %s873
          %s876 = sshll.u32 %s866, 4
          %s877 = int_to_ptr.vmem [resolvable:$true] %s876
          %879 = dma.vmem_to_hbm [thread:$0]  %s877, 128, %s874, %s863
        $region36: #{tpu_custom_call.1} parent=31 // pred_fallthru
          _
      $region32: #{tpu_custom_call.1} parent=5 // pred_fallthru
        _
      %p880 = scmp.le.s32.totalorder 2, %s12
      // Predicated region
      $region37: #{tpu_custom_call.1} parent=5 // pred_check
        %p881 = pneg %p880
      $region38: #{tpu_custom_call.1} parent=5 // pred_check_branch
        %883 = sbr.rel (%p881) target = $region40
      $region39: #{tpu_custom_call.1} parent=5 // pred_region
        %s884 = ssub.s32 %s12, 2
        // Predicated region
        $region41: #{tpu_custom_call.1} parent=39 // pred_check
          %p885 = pneg %p109
        $region42: #{tpu_custom_call.1} parent=39 // pred_check_branch
          %887 = sbr.rel (%p885) target = $region44
        $region43: #{tpu_custom_call.1} parent=39 // pred_region
          %s888 = sand.u32 %s94, 1
          %s889 = scalar_lea.sflag [#allocation3], %s888
          %s890 = sand.u32 %s94, 1
          %s891 = smul.addr %s890, 8
          %s892 = scalar_lea.vmem [#allocation2], %s891
          %893 = dma.done %s889, 128
        $region44: #{tpu_custom_call.1} parent=39 // pred_fallthru
          _
      $region40: #{tpu_custom_call.1} parent=5 // pred_fallthru
        _
    $region6: #{tpu_custom_call.1} parent=1 // loop_footer
      %s16 = sadd.s32 1, %s12
    $region7: #{tpu_custom_call.1} parent=1 // loop_footer_branch
      %11 = sbr.rel target = $region3
    $region8: #{tpu_custom_call.1} parent=1 // loop_exit
      _
    %894 = vsyncpa [#allocation3], 1
    %s895 = scalar_lea.sflag [#allocation3], 1
    %896 = vsyncpa %s895, 1

</llo_original>
